<compile_context>
chip_gen: v5e
topology: v5e:2x2
jax: 0.10.0
libtpu: 0.0.40
codegen_flags: <defaults>
</compile_context>

<pallas_src>
import jax
import jax.numpy as jnp
from jax import lax
from jax.experimental import pallas as pl
from jax.experimental.pallas import tpu as pltpu


def _round_up(n, m):
    return -(-n // m) * m


_HAS_BUFFERED = hasattr(pl, "Buffered")


def _const_block_spec(shape):
    """BlockSpec for a block whose index_map is constant across the grid.

    The block is fetched once and stays resident; single-buffer it so it costs
    1x VMEM instead of the default 2x (biggest win on v7x's 64 MiB VMEM).
    """
    if _HAS_BUFFERED:
        return pl.BlockSpec(shape, lambda i: (0, 0), pipeline_mode=pl.Buffered(1))
    return pl.BlockSpec(shape, lambda i: (0, 0))


def _vmem_capacity_bytes():
    # Generation aware: 128 MiB on v5e/v6e, 64 MiB per core on v7x.  Fall back
    # to the most conservative value if the query is unavailable.
    try:
        return int(pltpu.get_tpu_info().vmem_capacity_bytes)
    except Exception:
        return 64 * 1024 * 1024


def _linear_softmax_kernel(x_ref, wt_ref, b_ref, o_ref):
    # MXU: (tm, f_in) @ (f_in, f_out_p) -> (tm, f_out_p), f32 accumulation.
    logits = jnp.dot(x_ref[...], wt_ref[...], preferred_element_type=jnp.float32)
    logits = logits + b_ref[...]          # bias already f32, shape (1, f_out_p)

    # Numerically stable softmax along the lane axis.  Padded columns carry a
    # -1e30 bias, so exp underflows to exactly 0 there (zero softmax mass).
    m = jnp.max(logits, axis=-1, keepdims=True)
    e = jnp.exp(logits - m)
    denom = jnp.sum(e, axis=-1, keepdims=True)
    # Exact divide (NOT pl.reciprocal(approx=True)): downstream checks assume
    # each row sums to 1; the approx reciprocal's per-row relative error
    # violated that beyond 1e-3.
    o_ref[...] = (e / denom).astype(o_ref.dtype)


def softmax_layer_forward(x, weight, bias, *, tm=None, keep_padded_columns=False):
    """Pallas equivalent of softmax(nn.Linear(in_features, out_features)(x), -1).

    x:      (B, in_features)
    weight: (out_features, in_features)   -- PyTorch nn.Linear layout
    bias:   (out_features,)
    """
    B, f_in = x.shape
    f_out, f_in_w = weight.shape
    assert f_in_w == f_in and bias.shape == (f_out,)
    out_dtype = x.dtype
    # TODO(synk): on v5e (lowest HBM BW, single vector-store slot) emit bf16
    # probabilities when the consumer allows it — halves output store bytes.

    # ---- lane-dense output: pad out_features up to a multiple of 128 --------
    # TODO(synk): for compute-bound shapes (large f_in) pad to 256 on v6e/v7x
    # to fill the 256-wide MXU column dimension; keep 128 when mem-bound.
    f_out_p = _round_up(f_out, 128)
    pad_n = f_out_p - f_out

    # Pre-transpose ONCE in the wrapper so the kernel feeds the MXU a
    # lane-dense (f_in, f_out_p) RHS instead of re-transposing the weight tile
    # inside every grid step.  (Production: store the weight pre-transposed.)
    w_t = weight.T                                    # (f_in, f_out)
    b_f32 = bias.astype(jnp.float32)                  # cast hoisted out of kernel
    if pad_n:
        w_t = jnp.pad(w_t, ((0, 0), (0, pad_n)))
        b_f32 = jnp.pad(b_f32, (0, pad_n), constant_values=-1e30)
    b2 = b_f32.reshape(1, f_out_p)

    # ---- row-tile selection from a generation-aware VMEM budget -------------
    x_item = jnp.dtype(x.dtype).itemsize
    out_item = jnp.dtype(out_dtype).itemsize
    sublane = max(8, 32 // x_item)      # 8 rows (f32), 16 (bf16), 32 (int8/fp8)

    w_copies = 1 if _HAS_BUFFERED else 2        # Buffered(1) -> single weight copy
    w_bytes = w_copies * (f_in * f_out_p * w_t.dtype.itemsize + f_out_p * 4)
    per_row = 2 * (f_in * x_item + f_out_p * out_item)   # x/out double-buffered

    vmem_cap = _vmem_capacity_bytes()
    vmem_budget = vmem_cap * 3 // 4             # headroom for Mosaic scratch
    # TODO(synk): when 1-2x the weight exceeds the VMEM budget, switch to an
    # out_features-tiled online softmax (flash-style running max/sum over an
    # 'arbitrary' N grid axis) instead of clamping tm to one sublane.
    if tm is None:
        avail = vmem_budget - w_bytes
        tm_cap = max(sublane, min(1024, (avail // per_row) // sublane * sublane))
    else:
        tm_cap = max(sublane, _round_up(int(tm), sublane))

    if B <= tm_cap and B < 2 * sublane:
        tm = B                               # single tile; block == full batch dim
    else:
        num_tiles = max(2, pl.cdiv(B, tm_cap))   # >=2 steps: DMA/compute overlap
        num_tiles = _round_up(num_tiles, 2)      # even count: both v7x TCs busy
        rows = pl.cdiv(B, num_tiles)
        base = 128 if rows >= 128 else sublane   # MXU / sublane friendly rows
        tm = min(_round_up(rows, base), tm_cap)

    grid = (pl.cdiv(B, tm),)

    # Explicit VMEM limit sized to the chosen tiles, capped under the physical
    # capacity of the current TPU generation.
    needed = w_bytes + tm * per_row
    vmem_limit = int(min(vmem_cap - 4 * 1024 * 1024,
                         max(32 * 1024 * 1024, int(1.25 * needed))))

    out = pl.pallas_call(
        _linear_softmax_kernel,
        out_shape=jax.ShapeDtypeStruct((B, f_out_p), out_dtype),
        grid=grid,
        in_specs=[
            # x row tile (double-buffered by the pipeline).
            # TODO(synk): raise to pl.Buffered(3) if profiling shows exposed
            # DMA on the x stream (small f_in, light per-tile compute).
            pl.BlockSpec((tm, f_in), lambda i: (i, 0)),
            _const_block_spec((f_in, f_out_p)),   # resident pre-transposed weight
            _const_block_spec((1, f_out_p)),      # resident f32 bias row
        ],
        out_specs=pl.BlockSpec((tm, f_out_p), lambda i: (i, 0)),
        compiler_params=pltpu.CompilerParams(
            dimension_semantics=("parallel",),
            vmem_limit_bytes=vmem_limit,
        ),
    )(x, w_t, b2)

    # No batch padding / row slicing: the grid's partial last block is masked
    # on store.  Padded columns (exactly zero probability) are sliced off
    # unless the caller opts to keep the lane-padded layout.
    if keep_padded_columns or pad_n == 0:
        return out
    return out[:, :f_out]


if __name__ == "__main__":
    key = jax.random.PRNGKey(0)

    def run_case(B, in_f, out_f, key):
        kx, kw, kb, key = jax.random.split(key, 4)
        x = jax.random.normal(kx, (B, in_f), dtype=jnp.float32)
        bound = 1.0 / float(in_f) ** 0.5
        weight = jax.random.uniform(kw, (out_f, in_f), jnp.float32, -bound, bound)
        bias = jax.random.uniform(kb, (out_f,), jnp.float32, -bound, bound)

        out = jax.block_until_ready(softmax_layer_forward(x, weight, bias))

        logits = jnp.dot(x, weight.T, precision=lax.Precision.HIGHEST) + bias
        ref = jax.nn.softmax(logits, axis=-1)
        assert out.shape == (B, out_f)
        assert jnp.allclose(out, ref, atol=2e-3, rtol=2e-3)
        assert jnp.allclose(jnp.sum(out, axis=-1), 1.0, atol=1e-3)
        return key

    key = run_case(8, 32, 16, key)     # toy spec shape: single tile, col padding
    key = run_case(48, 64, 200, key)   # multi-tile grid + out_features padding
    key = run_case(37, 64, 200, key)   # partial (masked) final batch block
    print("KERNEL_OK")
</pallas_src>

<mosaic_0001>
module attributes {stable_mosaic.version = 11 : i64} {
  func.func @_linear_softmax_kernel(%arg0: i32, %arg1: memref<8x32xf32, #tpu.memory_space<vmem>>, %arg2: memref<32x128xf32, #tpu.memory_space<vmem>>, %arg3: memref<1x128xf32, #tpu.memory_space<vmem>>, %arg4: memref<8x128xf32, #tpu.memory_space<vmem>>) attributes {dimension_semantics = [#tpu.dimension_semantics<parallel>], iteration_bounds = array<i64: 1>, scalar_prefetch = 0 : i64, scratch_operands = 0 : i64, tpu.core_type = #tpu.core_type<tc>, window_params = [{transform_indices = @transform_0, window_bounds = array<i64: 8, 32>}, {pipeline_mode = #tpu.pipeline_mode<synchronous>, transform_indices = @transform_1, window_bounds = array<i64: 32, 128>}, {pipeline_mode = #tpu.pipeline_mode<synchronous>, transform_indices = @transform_2, window_bounds = array<i64: 1, 128>}, {transform_indices = @transform_3, window_bounds = array<i64: 8, 128>}]} {
    %c0 = arith.constant 0 : index
    %c0_0 = arith.constant 0 : index
    %0 = vector.load %arg1[%c0, %c0_0] : memref<8x32xf32, #tpu.memory_space<vmem>>, vector<8x32xf32>
    %c0_1 = arith.constant 0 : index
    %c0_2 = arith.constant 0 : index
    %1 = vector.load %arg2[%c0_1, %c0_2] : memref<32x128xf32, #tpu.memory_space<vmem>>, vector<32x128xf32>
    %cst = arith.constant dense<0.000000e+00> : vector<8x128xf32>
    %2 = tpu.matmul %0, %1, %cst {dimension_numbers = #tpu.dot_dimension_numbers<[1], [0], [0], [1], [0, 0, 1, 1], [], []>} : vector<8x32xf32>, vector<32x128xf32>, vector<8x128xf32> -> vector<8x128xf32>
    %c0_3 = arith.constant 0 : index
    %c0_4 = arith.constant 0 : index
    %3 = vector.load %arg3[%c0_3, %c0_4] : memref<1x128xf32, #tpu.memory_space<vmem>>, vector<1x128xf32>
    %4 = vector.broadcast %3 : vector<1x128xf32> to vector<8x128xf32>
    %5 = arith.addf %2, %4 : vector<8x128xf32>
    %cst_5 = arith.constant dense<0xFF800000> : vector<8xf32>
    %6 = vector.multi_reduction <maximumf>, %5, %cst_5 [1] : vector<8x128xf32> to vector<8xf32>
    %7 = vector.shape_cast %6 : vector<8xf32> to vector<8x1xf32>
    %8 = vector.broadcast %7 : vector<8x1xf32> to vector<8x128xf32>
    %9 = arith.subf %5, %8 : vector<8x128xf32>
    %10 = math.exp %9 : vector<8x128xf32>
    %cst_6 = arith.constant dense<0.000000e+00> : vector<8xf32>
    %11 = vector.multi_reduction <add>, %10, %cst_6 [1] : vector<8x128xf32> to vector<8xf32>
    %12 = vector.shape_cast %11 : vector<8xf32> to vector<8x1xf32>
    %13 = vector.broadcast %12 : vector<8x1xf32> to vector<8x128xf32>
    %14 = arith.divf %10, %13 : vector<8x128xf32>
    %c0_7 = arith.constant 0 : index
    %c0_8 = arith.constant 0 : index
    %15 = vector.load %arg4[%c0_7, %c0_8] : memref<8x128xf32, #tpu.memory_space<vmem>>, vector<8x128xf32>
    tpu.vector_store %arg4[%c0_7, %c0_8], %14 {strides = array<i32>} : memref<8x128xf32, #tpu.memory_space<vmem>>, vector<8x128xf32>,
    return
  }
  func.func @transform_0(%arg0: i32) -> (i32, i32) {
    %c0_i32 = arith.constant 0 : i32
    %c0_i32_0 = arith.constant 0 : i32
    return %arg0, %c0_i32 : i32, i32
  }
  func.func @transform_1(%arg0: i32) -> (i32, i32) {
    %c0_i32 = arith.constant 0 : i32
    %c0_i32_0 = arith.constant 0 : i32
    %c0_i32_1 = arith.constant 0 : i32
    return %c0_i32, %c0_i32_0 : i32, i32
  }
  func.func @transform_2(%arg0: i32) -> (i32, i32) {
    %c0_i32 = arith.constant 0 : i32
    %c0_i32_0 = arith.constant 0 : i32
    %c0_i32_1 = arith.constant 0 : i32
    return %c0_i32, %c0_i32_0 : i32, i32
  }
  func.func @transform_3(%arg0: i32) -> (i32, i32) {
    %c0_i32 = arith.constant 0 : i32
    %c0_i32_0 = arith.constant 0 : i32
    return %arg0, %c0_i32 : i32, i32
  }
}

</mosaic_0001>

<llo_original>
// kernel: tpu_custom_call.1
$region0: #{tpu_custom_call.1}
  #allocation0 [shape = 'u32[]', space=smem, size = 0x4, offset = 0x4, fixed_abs, tag = 'smem constant byte address 0x4 - core index']
  #allocation1 [shape = 'u32[72,128]{1,0:T(1,128)}', space=vmem, size = 0x9000, scoped, tag = 'internal scratch']
  %s0 = inlined_call_operand.hbm [shape: f32[8,32], index: 0, kind: input, shape index: {}]
  %s1 = inlined_call_operand.hbm [shape: f32[32,128], index: 1, kind: input, shape index: {}]
  %s2 = inlined_call_operand.vmem [shape: f32[1,128], index: 2, kind: input, shape index: {}]
  %s3 = inlined_call_operand.hbm [shape: f32[8,128], index: 3, kind: output, shape index: {}]
  %s4 = sld [smem:[#allocation0]]
  $region30: #{tpu_custom_call.1} parent=0
    _
  %s6 = ssub.s32 1, %s4
  %s7 = scalar_select 0, %s6, %s4
  $region1: #{tpu_custom_call.1} parent=0
    #allocation2 [shape = 'u8[4096]{0}', space=vmem, size = 0x1000, scoped, tag = 'input window, operand 0, single buffered']
    #allocation3 [shape = 's32[1]{0}', space=sflag, size = 0x4, scoped, tag = 'scoped memory for tpu_custom_call.1']
    #allocation4 [shape = 's32[1]{0}', space=sflag, size = 0x4, scoped, tag = 'scoped memory for tpu_custom_call.1']
    #allocation5 [shape = 'u8[16384]{0}', space=vmem, size = 0x4000, scoped, tag = 'input window, operand 1, single buffered']
    #allocation6 [shape = 's32[1]{0}', space=sflag, size = 0x4, scoped, tag = 'scoped memory for tpu_custom_call.1']
    #allocation7 [shape = 'u8[4096]{0}', space=vmem, size = 0x1000, scoped, tag = 'output window, operand 0, single buffered']
    %8 = vsyncpa [#allocation3], 0
    %9 = vsyncpa [#allocation6], 0
    %10 = vsyncpa [#allocation4], 0
    // Predicated region
    $region2: #{tpu_custom_call.1} parent=1 // pred_check
      _
    $region3: #{tpu_custom_call.1} parent=1 // pred_check_branch
      %12 = sbr.rel (0) target = $region5
    $region4: #{tpu_custom_call.1} parent=1 // pred_region
      %14 = vsyncadd [#allocation3], 0
      %s16 = sshll.u32 %s0, 4
      %s17 = int_to_ptr.hbm [resolvable:$true] %s16
      %s18 = sshll.u32 [#allocation2], 4
      %s19 = int_to_ptr.vmem [resolvable:$true] %s18
      %21 = dma.hbm_to_vmem [thread:$0]  %s17, 128, %s19, [#allocation3]
    $region5: #{tpu_custom_call.1} parent=1 // pred_fallthru
      _
    // Predicated region
    $region6: #{tpu_custom_call.1} parent=1 // pred_check
      _
    $region7: #{tpu_custom_call.1} parent=1 // pred_check_branch
      %23 = sbr.rel (0) target = $region9
    $region8: #{tpu_custom_call.1} parent=1 // pred_region
      %25 = vsyncadd [#allocation6], 0
      %s26 = sshll.u32 %s1, 4
      %s27 = int_to_ptr.hbm [resolvable:$true] %s26
      %s28 = sshll.u32 [#allocation5], 4
      %s29 = int_to_ptr.vmem [resolvable:$true] %s28
      %34 = dma.hbm_to_vmem [thread:$0]  %s27, 512, %s29, [#allocation6], 128, 128, 8
    $region9: #{tpu_custom_call.1} parent=1 // pred_fallthru
      _
    // Predicated region
    $region10: #{tpu_custom_call.1} parent=1 // pred_check
      _
    $region11: #{tpu_custom_call.1} parent=1 // pred_check_branch
      %36 = sbr.rel (0) target = $region13
    $region12: #{tpu_custom_call.1} parent=1 // pred_region
      _
    $region13: #{tpu_custom_call.1} parent=1 // pred_fallthru
      _
    // Predicated region
    $region14: #{tpu_custom_call.1} parent=1 // pred_check
      _
    $region15: #{tpu_custom_call.1} parent=1 // pred_check_branch
      %38 = sbr.rel (0) target = $region17
    $region16: #{tpu_custom_call.1} parent=1 // pred_region
      %40 = dma.done [#allocation3], 128
    $region17: #{tpu_custom_call.1} parent=1 // pred_fallthru
      _
    // Predicated region
    $region18: #{tpu_custom_call.1} parent=1 // pred_check
      _
    $region19: #{tpu_custom_call.1} parent=1 // pred_check_branch
      %42 = sbr.rel (0) target = $region21
    $region20: #{tpu_custom_call.1} parent=1 // pred_region
      %44 = dma.done [#allocation6], 512
    $region21: #{tpu_custom_call.1} parent=1 // pred_fallthru
      _
    %v45 = vld [vmem:[#allocation2] sm:$0xff]
    %v46 = vld [vmem:[#allocation5] sm:$0xff]
    %v47 = vld [vmem:[#allocation5 + $0x8] sm:$0xff]
    %v48 = vld [vmem:[#allocation5 + $0x10] sm:$0xff]
    %v49 = vld [vmem:[#allocation5 + $0x18] sm:$0xff]
    %v50 = vld [vmem:[%s2] sm:$0x1]
    %v52 = vperm.slane %v50, 0
    %vm54 = vcmask 261120
    %v56 = vsel %vm54, %v45, 0
    %58 = vmatpush.msra.mxu0 0.0
    %59 = vmatpush.msra.mxu0 0.0
    %60 = vmatpush.msra.mxu0 0.0
    %61 = vmatpush.msra.mxu0 0.0
    %62 = vmatpush.msra.mxu0 0.0
    %63 = vmatpush.msra.mxu0 0.0
    %64 = vmatpush.msra.mxu0 0.0
    %65 = vmatpush.msra.mxu0 0.0
    %66 = vmatpush.msra.mxu0 0.0
    %67 = vmatpush.msra.mxu0 0.0
    %68 = vmatpush.msra.mxu0 0.0
    %69 = vmatpush.msra.mxu0 0.0
    %70 = vmatpush.msra.mxu0 %v49
    %71 = vmatpush.msra.mxu0 %v48
    %72 = vmatpush.msra.mxu0 %v47
    %73 = vmatpush.msra.mxu0 %v46
    %74 = vmatmul.f32.gmra.mxu0 %v56
    %v75 = vpop.f32.mrf.mxu0
    %v76 = vadd.f32 %v52, %v75
    %77 = vdwg.mxu0
    %78 = vmax.xlane.f32.xlu0 %v76
    %v79 = vpop.xlane.xlu0 %78
    %v80 = vsub.f32 %v76, %v79
    %v81 = vmul.f32 %v80, 1.442695
    %v82 = vpow.pop %v81
    %83 = vadd.xlane.f32.xlu0 %v82
    %v84 = vpop.xlane.xlu0 %83
    %v85 = vrcp.pop %v84
    %v86 = vmul.f32 %v84, %v85
    %v87 = vsub.f32 1.0, %v86
    %v88 = vmul.f32 %v85, %v87
    %v89 = vadd.f32 %v85, %v88
    %vm90 = vweird.f32 %v84
    %vm91 = vweird.f32 %v85
    %vm92 = vmor %vm90, %vm91
    %v93 = vsel %vm92, %v85, %v89
    %v94 = vand.u32 2147483647, %v84
    %vm95 = vcmp.eq.f32.partialorder %v94, 8.507059e+37
    %v96 = vand.u32 %v84, 2147483648
    %v97 = vor.u32 1.1754944e-38, %v96
    %v98 = vsel %vm95, %v97, %v93
    %v99 = vmul.f32 %v82, %v98
    %100 = vst [vmem:[#allocation7] sm:$0xff] %v99
    // Predicated region
    $region22: #{tpu_custom_call.1} parent=1 // pred_check
      _
    $region23: #{tpu_custom_call.1} parent=1 // pred_check_branch
      %102 = sbr.rel (0) target = $region25
    $region24: #{tpu_custom_call.1} parent=1 // pred_region
      %104 = vsyncadd [#allocation4], 0
      %s106 = sshll.u32 [#allocation7], 4
      %s107 = int_to_ptr.vmem [resolvable:$true] %s106
      %s108 = sshll.u32 %s3, 4
      %s109 = int_to_ptr.hbm [resolvable:$true] %s108
      %111 = dma.vmem_to_hbm [thread:$0]  %s107, 128, %s109, [#allocation4]
    $region25: #{tpu_custom_call.1} parent=1 // pred_fallthru
      _
    // Predicated region
    $region26: #{tpu_custom_call.1} parent=1 // pred_check
      _
    $region27: #{tpu_custom_call.1} parent=1 // pred_check_branch
      %113 = sbr.rel (0) target = $region29
    $region28: #{tpu_custom_call.1} parent=1 // pred_region
      %115 = dma.done [#allocation4], 128
    $region29: #{tpu_custom_call.1} parent=1 // pred_fallthru
      _
    %116 = vsyncpa [#allocation3], 1
    %117 = vsyncpa [#allocation6], 1
    %118 = vsyncpa [#allocation4], 1

</llo_original>
